<compile_context>
chip_gen: v7x
topology: tpu7x:2x2x1
jax: 0.10.0
libtpu: 0.0.40
codegen_flags: <defaults>
</compile_context>

<pallas_src>
import jax
import jax.numpy as jnp
from jax.experimental import pallas as pl
from jax.experimental.pallas import tpu as pltpu

VMEM_SPEC = pl.BlockSpec(memory_space=pltpu.MemorySpace.VMEM)

C_PAD = 128   # lane width of every matmul operand / activation scratch
GROUP = 8     # per-tap channel-group stride in the packed K dim (== backbone width)
PW = 16       # left zero-halo width of the W axis: valid region starts at a
              # bf16-tile-aligned column; the right halo is provided by roll wrap-around


def _round_up(x, m):
    return (x + m - 1) // m * m


def _detect_roll_sign():
    """Calibrate pltpu.roll's rotate convention (jnp.roll-like vs reversed) once."""
    def probe(x_ref, o_ref):
        o_ref[...] = pltpu.roll(x_ref[...], 1, axis=1)

    x = jnp.broadcast_to(jnp.arange(128, dtype=jnp.float32), (8, 128))
    y = pl.pallas_call(probe,
                       out_shape=jax.ShapeDtypeStruct((8, 128), jnp.float32),
                       in_specs=[VMEM_SPEC], out_specs=VMEM_SPEC)(x)
    # jnp.roll semantics: out[j] = in[j - 1]  ->  out[0] == 127
    return 1 if float(y[0, 0]) == 127.0 else -1


# ------------------------------ fused Pallas kernel ------------------------------ #

def _make_kernel(roll_sign):
    def _roll(v, shift, axis):
        shift = (roll_sign * shift) % v.shape[axis]
        return v if shift == 0 else pltpu.roll(v, shift, axis)

    def kernel(x_ref, conv_w_ref, conv_shift_ref, fc_w_ref, fc_b_ref, out_ref,
               pad_ref, res_ref):
        # x_ref          : [1, H, W, cin] f32   (raw image, one batch element)
        # conv_w_ref     : [5, 128, 128] bf16   (3x3 taps packed into K at stride GROUP,
        #                                        eval-BN scale pre-folded)
        # conv_shift_ref : [5, 1, 128] f32      (folded eval-mode BN shift)
        # fc_w_ref       : [128, OUT_PAD] bf16  (all heads concatenated, lane-dense)
        # fc_b_ref       : [1, OUT_PAD] f32
        # out_ref        : [1, 8, OUT_PAD] f32  (row 0 holds the logits)
        # pad_ref        : [H+2, PW+W, 128] bf16  zero-halo activation scratch
        # res_ref        : [H, W, 128] f32        block residual
        hp, wp, _ = pad_ref.shape
        h, w, _ = res_ref.shape
        cin = x_ref.shape[-1]

        # Fresh zero state every grid step (halo + unused lanes).  No state is carried
        # across iterations, so the batch axis is safe to run "parallel" on megacore.
        pad_ref[...] = jnp.zeros_like(pad_ref)
        pad_ref[1:1 + h, PW:PW + w, :cin] = x_ref[0].astype(pad_ref.dtype)

        def conv3x3(layer):
            """3x3 conv as ONE lane-packed-K MXU matmul over the full padded width."""
            patches = None
            for kh in range(3):
                # aligned full-width row band (each H-slab is a whole number of tiles)
                band = pad_ref[kh:kh + h, :, :].astype(jnp.float32)
                for kw in range(3):
                    t = 3 * kh + kw
                    tap = _roll(band, 1 - kw, 1)       # kw column shift (sublane axis)
                    tap = _roll(tap, GROUP * t, 2)     # place channels at lane group t
                    patches = tap if patches is None else patches + tap
            y = jnp.dot(patches.reshape(h * wp, C_PAD).astype(jnp.bfloat16),
                        conv_w_ref[layer], preferred_element_type=jnp.float32)
            # keep only the valid columns (aligned slice), add the folded BN shift
            return y.reshape(h, wp, C_PAD)[:, PW:PW + w, :] + conv_shift_ref[layer]

        def store_center(y):
            pad_ref[1:1 + h, PW:PW + w, :] = y.astype(pad_ref.dtype)

        # ---- stem: conv + BN + ReLU
        y = jnp.maximum(conv3x3(0), 0.0)

        # ---- basic block 1
        res_ref[...] = y
        store_center(y)
        y = jnp.maximum(conv3x3(1), 0.0)
        store_center(y)
        y = jnp.maximum(conv3x3(2) + res_ref[...], 0.0)

        # ---- basic block 2
        res_ref[...] = y
        store_center(y)
        y = jnp.maximum(conv3x3(3), 0.0)
        store_center(y)
        y = jnp.maximum(conv3x3(4) + res_ref[...], 0.0)

        # ---- global average pool (extractor.fc == Identity -> pooled features)
        feat = jnp.mean(y.reshape(h * w, C_PAD), axis=0, keepdims=True)   # (1, 128) f32

        # ---- all FC heads fused into one lane-dense matmul; the 8 replicated rows keep
        #      the output store (8,128)-tile aligned (the wrapper reads row 0).
        feat8 = jnp.broadcast_to(feat, (8, C_PAD)).astype(jnp.bfloat16)
        out_ref[0] = jnp.dot(feat8, fc_w_ref[...],
                             preferred_element_type=jnp.float32) + fc_b_ref[...]

    return kernel


# --------------------------------- JAX wrapper ----------------------------------- #

def resnet_multi_forward(x_nchw, packed, roll_sign=1):
    """Equivalent of ResNet_Multi.forward: extractor then one Linear head per label."""
    x = jnp.transpose(x_nchw, (0, 2, 3, 1)).astype(jnp.float32)      # NCHW -> NHWC, raw
    n, h, w, cin = x.shape
    hp, wp = h + 2, w + PW
    assert wp % 16 == 0 and cin <= GROUP
    out_pad = packed["fc_w"].shape[1]

    out = pl.pallas_call(
        _make_kernel(roll_sign),
        out_shape=jax.ShapeDtypeStruct((n, 8, out_pad), jnp.float32),
        grid=(n,),
        in_specs=[
            pl.BlockSpec((1, h, w, cin), lambda b: (b, 0, 0, 0)),
            # weights: constant index_map -> fetched once, VMEM-resident across the grid
            pl.BlockSpec(packed["conv_w"].shape, lambda b: (0, 0, 0)),
            pl.BlockSpec(packed["conv_shift"].shape, lambda b: (0, 0, 0)),
            pl.BlockSpec(packed["fc_w"].shape, lambda b: (0, 0)),
            pl.BlockSpec(packed["fc_b"].shape, lambda b: (0, 0)),
        ],
        out_specs=pl.BlockSpec((1, 8, out_pad), lambda b: (b, 0, 0)),
        scratch_shapes=[
            pltpu.VMEM((hp, wp, C_PAD), jnp.bfloat16),   # zero-halo activation buffer
            pltpu.VMEM((h, w, C_PAD), jnp.float32),      # block residual
        ],
        compiler_params=pltpu.CompilerParams(
            dimension_semantics=("parallel",),            # one image per TC on v7x
            vmem_limit_bytes=32 * 1024 * 1024),           # far above the ~1 MiB used
    )(x, packed["conv_w"], packed["conv_shift"], packed["fc_w"], packed["fc_b"])

    logits = out[:, 0, :]
    output_multi = {}
    for name, (off, nclass) in packed["head_slices"].items():
        output_multi[name] = logits[:, off:off + nclass]
    return output_multi


# ------------------------------ parameter handling ------------------------------- #

def _folded_bn(key, c):
    k1, k2, k3, k4 = jax.random.split(key, 4)
    gamma = jax.random.uniform(k1, (c,), minval=0.5, maxval=1.5)
    beta = jax.random.normal(k2, (c,)) * 0.1
    mean = jax.random.normal(k3, (c,)) * 0.1
    var = jax.random.uniform(k4, (c,), minval=0.5, maxval=1.5)
    scale = gamma / jnp.sqrt(var + 1e-5)
    shift = beta - mean * scale
    return (scale.reshape(1, c).astype(jnp.float32),
            shift.reshape(1, c).astype(jnp.float32))


def _conv_w(key, cin, cout):
    # weight layout [kh*kw*cin, cout], rows ordered (kh, kw, cin)
    return (jax.random.normal(key, (9 * cin, cout)) * 0.1).astype(jnp.float32)


def init_params(key, in_ch, width, label_num_classes):
    keys = jax.random.split(key, 16)
    stem_scale, stem_shift = _folded_bn(keys[1], width)

    def block_params(k):
        ks = jax.random.split(k, 4)
        s1, sh1 = _folded_bn(ks[1], width)
        s2, sh2 = _folded_bn(ks[3], width)
        return {"w1": _conv_w(ks[0], width, width), "scale1": s1, "shift1": sh1,
                "w2": _conv_w(ks[2], width, width), "scale2": s2, "shift2": sh2}

    fc_multi = {}
    head_keys = jax.random.split(keys[5], len(label_num_classes))
    for hk, (label_name, num_outputs) in zip(head_keys, label_num_classes.items()):
        k_w, k_b = jax.random.split(hk)
        fc_multi["fc_" + label_name] = {
            "w": (jax.random.normal(k_w, (width, num_outputs)) * 0.1).astype(jnp.float32),
            "b": (jax.random.normal(k_b, (1, num_outputs)) * 0.1).astype(jnp.float32),
        }

    return {"stem_w": _conv_w(keys[0], in_ch, width),
            "stem_scale": stem_scale, "stem_shift": stem_shift,
            "block1": block_params(keys[2]), "block2": block_params(keys[3]),
            "fc_multi": fc_multi}


def pack_params(params, in_ch, width):
    """Fold BN scale into the conv weights, pack the 3x3 taps into the K dim at stride
    GROUP, zero-pad to the 128-lane width, cast matmul weights to bf16, fuse FC heads."""
    assert width == GROUP and 9 * GROUP <= C_PAD and in_ch <= GROUP

    def pack_conv(w_real, cin, scale):
        # w_real: (9*cin, width), rows ordered (tap, channel); scale folded per out-chan
        w9 = (w_real * scale).reshape(9, cin, width)
        packed = jnp.zeros((C_PAD, C_PAD), jnp.float32)
        for t in range(9):
            packed = packed.at[GROUP * t:GROUP * t + cin, :width].set(w9[t])
        return packed

    def pack_shift(shift):
        return jnp.zeros((1, C_PAD), jnp.float32).at[:, :width].set(shift)

    b1, b2 = params["block1"], params["block2"]
    conv_specs = [
        (params["stem_w"], in_ch, params["stem_scale"], params["stem_shift"]),
        (b1["w1"], width, b1["scale1"], b1["shift1"]),
        (b1["w2"], width, b1["scale2"], b1["shift2"]),
        (b2["w1"], width, b2["scale1"], b2["shift1"]),
        (b2["w2"], width, b2["scale2"], b2["shift2"]),
    ]
    conv_w = jnp.stack([pack_conv(w, cin, s) for (w, cin, s, _) in conv_specs])
    conv_shift = jnp.stack([pack_shift(sh) for (_, _, _, sh) in conv_specs])

    head_slices = {}
    w_cols, b_cols = [], []
    off = 0
    for name, hpar in params["fc_multi"].items():
        nout = hpar["w"].shape[1]
        head_slices[name] = (off, nout)
        w_cols.append(hpar["w"])
        b_cols.append(hpar["b"])
        off += nout
    out_pad = _round_up(off, 128)
    fc_w = jnp.zeros((C_PAD, out_pad), jnp.float32).at[:width, :off].set(
        jnp.concatenate(w_cols, axis=1))
    fc_b = jnp.zeros((1, out_pad), jnp.float32).at[:, :off].set(
        jnp.concatenate(b_cols, axis=1))

    return {"conv_w": conv_w.astype(jnp.bfloat16),      # (5, 128, 128)
            "conv_shift": conv_shift,                    # (5, 1, 128) f32
            "fc_w": fc_w.astype(jnp.bfloat16), "fc_b": fc_b,
            "head_slices": head_slices}


# ------------------------- pure-JAX reference (for checking) --------------------- #

def _im2col_3x3(x_nhwc):
    n, h, w, c = x_nhwc.shape
    xp = jnp.pad(x_nhwc, ((0, 0), (1, 1), (1, 1), (0, 0)))
    cols = [xp[:, kh:kh + h, kw:kw + w, :] for kh in range(3) for kw in range(3)]
    return jnp.concatenate(cols, axis=-1).reshape(n * h * w, 9 * c)


def reference_forward(x_nchw, params):
    x = jnp.transpose(x_nchw, (0, 2, 3, 1)).astype(jnp.float32)
    n, h, w, _ = x.shape

    def conv_bn(act_nhwc, w9, scale, shift):
        p = _im2col_3x3(act_nhwc).astype(jnp.bfloat16)
        y = jnp.dot(p, w9.astype(jnp.bfloat16), preferred_element_type=jnp.float32)
        return y * scale + shift

    def block(act_nhwc, bp):
        nn_, hh, ww, cc = act_nhwc.shape
        ident = act_nhwc.reshape(nn_ * hh * ww, cc)
        y1 = jnp.maximum(conv_bn(act_nhwc, bp["w1"], bp["scale1"], bp["shift1"]), 0.0)
        y2 = conv_bn(y1.reshape(nn_, hh, ww, cc), bp["w2"], bp["scale2"], bp["shift2"]) + ident
        return jnp.maximum(y2, 0.0).reshape(nn_, hh, ww, cc)

    y = jnp.maximum(conv_bn(x, params["stem_w"], params["stem_scale"],
                            params["stem_shift"]), 0.0)
    y = block(y.reshape(n, h, w, -1), params["block1"])
    y = block(y, params["block2"])
    feat = jnp.mean(y.reshape(n, h * w, y.shape[-1]), axis=1)

    out = {}
    for name, hpar in params["fc_multi"].items():
        out[name] = (jnp.dot(feat.astype(jnp.bfloat16), hpar["w"].astype(jnp.bfloat16),
                             preferred_element_type=jnp.float32) + hpar["b"])
    return out


# -------------------------------------- main ------------------------------------- #

if __name__ == "__main__":
    key = jax.random.PRNGKey(0)
    k_param, k_x = jax.random.split(key)

    label_num_classes = {"age": 3, "gender": 2}           # two classification heads
    in_ch, width = 4, 8                                   # input_size_fc == width == 8
    params = init_params(k_param, in_ch, width, label_num_classes)
    packed = pack_params(params, in_ch, width)

    x = jax.random.normal(k_x, (2, in_ch, 16, 16), dtype=jnp.float32)   # NCHW, as PyTorch

    roll_sign = _detect_roll_sign()
    fwd = jax.jit(lambda inp: resnet_multi_forward(inp, packed, roll_sign))
    output_multi = fwd(x)
    reference = reference_forward(x, params)

    # 3e-2 tolerance: BN scale is folded into the bf16 conv weights in the kernel (per
    # review), a slightly different quantization point than the reference's f32 post-scale.
    for name, (off, nclass) in packed["head_slices"].items():
        v = jax.block_until_ready(output_multi[name])
        assert v.shape == (x.shape[0], nclass), (name, v.shape)
        err = float(jnp.max(jnp.abs(v - reference[name])))
        assert err < 3e-2, f"{name}: max abs err {err}"
    print("KERNEL_OK")
</pallas_src>

<mosaic_0001>
module attributes {stable_mosaic.version = 11 : i64} {
  func.func @probe(%arg0: memref<8x128xf32, #tpu.memory_space<vmem>>, %arg1: memref<8x128xf32, #tpu.memory_space<vmem>>) attributes {dimension_semantics = [], scalar_prefetch = 0 : i64, scratch_operands = 0 : i64, tpu.core_type = #tpu.core_type<tc>} {
    %c0 = arith.constant 0 : index
    %c0_0 = arith.constant 0 : index
    %0 = vector.load %arg0[%c0, %c0_0] : memref<8x128xf32, #tpu.memory_space<vmem>>, vector<8x128xf32>
    %c1_i32 = arith.constant 1 : i32
    %1 = tpu.dynamic_rotate %0 by %c1_i32 dim 1 : vector<8x128xf32>, i32 -> vector<8x128xf32>
    %c0_1 = arith.constant 0 : index
    %c0_2 = arith.constant 0 : index
    %2 = vector.load %arg1[%c0_1, %c0_2] : memref<8x128xf32, #tpu.memory_space<vmem>>, vector<8x128xf32>
    tpu.vector_store %arg1[%c0_1, %c0_2], %1 {strides = array<i32>} : memref<8x128xf32, #tpu.memory_space<vmem>>, vector<8x128xf32>,
    return
  }
}

</mosaic_0001>

<llo_original>
// kernel: tpu_custom_call.1
$region0: #{tpu_custom_call.1}
  #allocation0 [shape = 'u32[]', space=smem, size = 0x4, offset = 0x4, fixed_abs, tag = 'smem constant byte address 0x4 - core index']
  #allocation1 [shape = 'u32[144,128]{1,0:T(1,128)}', space=vmem, size = 0x12000, scoped, tag = 'internal scratch']
  %s0 = inlined_call_operand.hbm [shape: f32[8,128], index: 0, kind: input, shape index: {}]
  %s1 = inlined_call_operand.hbm [shape: f32[8,128], index: 1, kind: output, shape index: {}]
  %s2 = sld [smem:[#allocation0]]
  $region18: #{tpu_custom_call.1} parent=0
    _
  %s4 = ssub.s32 1, %s2
  %s5 = scalar_select 0, %s4, %s2
  $region1: #{tpu_custom_call.1} parent=0
    #allocation2 [shape = 'u8[4096]{0}', space=vmem, size = 0x1000, scoped, tag = 'input window, operand 0, single buffered']
    #allocation3 [shape = 's32[1]{0}', space=sflag, size = 0x4, scoped, tag = 'scoped memory for tpu_custom_call.1']
    #allocation4 [shape = 's32[1]{0}', space=sflag, size = 0x4, scoped, tag = 'scoped memory for tpu_custom_call.1']
    #allocation5 [shape = 'u8[4096]{0}', space=vmem, size = 0x1000, scoped, tag = 'output window, operand 0, single buffered']
    %6 = vsyncpa [#allocation3], 0
    %7 = vsyncpa [#allocation4], 0
    // Predicated region
    $region2: #{tpu_custom_call.1} parent=1 // pred_check
      _
    $region3: #{tpu_custom_call.1} parent=1 // pred_check_branch
      %9 = sbr.rel (0) target = $region5
    $region4: #{tpu_custom_call.1} parent=1 // pred_region
      %s11 = ssub.s32 128, 128
      %12 = vsyncadd [#allocation3], %s11
      %s14 = sshll.u32 [#allocation2], 4
      %s15 = int_to_ptr.vmem [resolvable:$true] %s14
      %17 = dma.hbm_to_vmem [thread:$0]  %s0, 128, %s15, [#allocation3]
    $region5: #{tpu_custom_call.1} parent=1 // pred_fallthru
      _
    // Predicated region
    $region6: #{tpu_custom_call.1} parent=1 // pred_check
      _
    $region7: #{tpu_custom_call.1} parent=1 // pred_check_branch
      %19 = sbr.rel (0) target = $region9
    $region8: #{tpu_custom_call.1} parent=1 // pred_region
      %20 = dma.done [#allocation3], 128
    $region9: #{tpu_custom_call.1} parent=1 // pred_fallthru
      _
    %v21 = vld [vmem:[#allocation2] sm:$0xff]
    %22 = vrot.lane.b32.xlu0 %v21, 1
    %v23 = vpop.permute.xlu0 %22
    %24 = vst [vmem:[#allocation5] sm:$0xff] %v23
    // Predicated region
    $region10: #{tpu_custom_call.1} parent=1 // pred_check
      _
    $region11: #{tpu_custom_call.1} parent=1 // pred_check_branch
      %26 = sbr.rel (0) target = $region13
    $region12: #{tpu_custom_call.1} parent=1 // pred_region
      %s28 = ssub.s32 128, 128
      %29 = vsyncadd [#allocation4], %s28
      %s31 = sshll.u32 [#allocation5], 4
      %s32 = int_to_ptr.vmem [resolvable:$true] %s31
      %34 = dma.vmem_to_hbm [thread:$0]  %s32, 128, %s1, [#allocation4]
    $region13: #{tpu_custom_call.1} parent=1 // pred_fallthru
      _
    // Predicated region
    $region14: #{tpu_custom_call.1} parent=1 // pred_check
      _
    $region15: #{tpu_custom_call.1} parent=1 // pred_check_branch
      %36 = sbr.rel (0) target = $region17
    $region16: #{tpu_custom_call.1} parent=1 // pred_region
      %37 = dma.done [#allocation4], 128
    $region17: #{tpu_custom_call.1} parent=1 // pred_fallthru
      _
    %38 = vsyncpa [#allocation3], 1
    %39 = vsyncpa [#allocation4], 1

</llo_original>
